<compile_context>
chip_gen: v7x
topology: tpu7x:2x2x1
jax: 0.10.0
libtpu: 0.0.40
codegen_flags: <defaults>
</compile_context>

<pallas_src>
from typing import NamedTuple, Optional

import jax
import jax.numpy as jnp
from jax.experimental import pallas as pl
from jax.experimental.pallas import tpu as pltpu


def _round_up(v: int, m: int) -> int:
    return (v + m - 1) // m * m


class LoraParams(NamedTuple):
    w_t: jax.Array               # (K_pad, N_pad) bf16 — W_base^T (LoRA merged in if merged=True)
    bias: jax.Array              # (1, N_pad)     f32
    a_t: Optional[jax.Array]     # (K_pad, r)     bf16, or None when merged
    b_eff: Optional[jax.Array]   # (r, N_pad)     bf16 (scaling + DoRA folded), or None when merged
    in_features: int
    out_features: int
    tn: int
    tk: int
    merged: bool


def prepare_lora_params(w_base, bias, lora_a, lora_b, magnitude, *,
                        lora_alpha: int, lora_r: int, use_dora: bool,
                        merge_weights: bool = True,
                        tn: int = 256, tk: int = 2048) -> LoraParams:
    """One-time parameter preprocessing (load time, NOT per forward): transpose to
    row-major matmul layout, fold scaling (and DoRA magnitude) into B, optionally merge
    the LoRA delta into the base weight, cast MXU operands to bf16, pad to tile multiples."""
    N, K = w_base.shape
    r = lora_a.shape[0]
    scaling = lora_alpha / lora_r

    tn = min(tn, _round_up(N, 128))
    tk = min(tk, _round_up(K, 128))
    assert tn % 128 == 0 and tk % 128 == 0
    N_pad = _round_up(N, tn)
    K_pad = _round_up(K, tk)

    wb_t = jnp.pad(w_base.T.astype(jnp.float32), ((0, K_pad - K), (0, N_pad - N)))
    bias2 = jnp.pad(bias.astype(jnp.float32).reshape(1, N), ((0, 0), (0, N_pad - N)))

    b_eff = lora_b.T.astype(jnp.float32) * jnp.float32(scaling)
    if use_dora:
        # Matches the reference module: only the LoRA branch is scaled by magnitude.
        b_eff = b_eff * magnitude.astype(jnp.float32)[None, :]
    b_eff = jnp.pad(b_eff, ((0, 0), (0, N_pad - N)))
    a_t = jnp.pad(lora_a.T.astype(jnp.float32), ((0, K_pad - K), (0, 0)))

    if merge_weights:
        # Inference fast path: fold the whole LoRA branch into the base weight (in f32,
        # then one bf16 cast).  Forward becomes a single GEMM + bias.
        w_eff = (wb_t + a_t @ b_eff).astype(jnp.bfloat16)
        return LoraParams(w_eff, bias2, None, None, K, N, tn, tk, True)

    return LoraParams(wb_t.astype(jnp.bfloat16), bias2,
                      a_t.astype(jnp.bfloat16), b_eff.astype(jnp.bfloat16),
                      K, N, tn, tk, False)


# ---------------------------------------------------------------------------
# Kernels
# ---------------------------------------------------------------------------

def _merged_kernel(x_ref, w_ref, bias_ref, o_ref, acc_ref):
    """Single GEMM + bias (LoRA pre-merged into w_ref).  Grid (i, j, k), k innermost."""
    k = pl.program_id(2)

    @pl.when(k == 0)
    def _init():
        # Bias folded into the accumulator init (saves a VPU add + broadcast at finalize).
        acc_ref[...] = jnp.broadcast_to(bias_ref[...], acc_ref.shape)

    acc_ref[...] += jnp.dot(x_ref[...], w_ref[...], preferred_element_type=jnp.float32)

    @pl.when(k == pl.num_programs(2) - 1)
    def _finalize():
        o_ref[...] = acc_ref[...].astype(o_ref.dtype)


def _lora_kernel(x_ref, w_ref, bias_ref, a_ref, b_ref, o_ref, acc_ref, aacc_ref):
    """Separate-adapter path: base GEMM + LoRA, with x@A hoisted to the first N tile.
    Requires the j (N-tile) grid axis to be 'arbitrary' (scratch is per-core)."""
    j = pl.program_id(1)
    k = pl.program_id(2)

    @pl.when(k == 0)
    def _init():
        acc_ref[...] = jnp.broadcast_to(bias_ref[...], acc_ref.shape)

    x = x_ref[...]                                                 # (tm, tk) bf16
    # Base path partial sum: x_k @ W_k -> (tm, tn) f32 accumulator.
    acc_ref[...] += jnp.dot(x, w_ref[...], preferred_element_type=jnp.float32)

    # x @ A is independent of j: compute it only on the first N tile and reuse the
    # persistent aacc scratch for every other N tile of the same row tile.
    @pl.when(j == 0)
    def _lora_a():
        @pl.when(k == 0)
        def _zero():
            aacc_ref[...] = jnp.zeros_like(aacc_ref)
        tk = x.shape[1]
        a_blk = a_ref[pl.ds(pl.multiple_of(k * tk, tk), tk), :]    # A^T is fully resident
        aacc_ref[...] += jnp.dot(x, a_blk, preferred_element_type=jnp.float32)

    @pl.when(k == pl.num_programs(2) - 1)
    def _finalize():
        # Second LoRA matmul; scaling and DoRA magnitude are already folded into b_ref.
        # bf16 downcast of the (tm, r) intermediate is a deliberate precision tradeoff.
        lora = jnp.dot(aacc_ref[...].astype(b_ref.dtype), b_ref[...],
                       preferred_element_type=jnp.float32)
        o_ref[...] = (acc_ref[...] + lora).astype(o_ref.dtype)


# ---------------------------------------------------------------------------
# Wrapper
# ---------------------------------------------------------------------------

def lora_forward(x, params: LoraParams, *, tm: Optional[int] = None):
    """x: [B, S, in_features]; returns [B, S, out_features] in x.dtype."""
    B, S, K = x.shape
    assert K == params.in_features
    N = params.out_features
    tn, tk = params.tn, params.tk
    K_pad, N_pad = params.w_t.shape

    M = B * S
    if tm is None:
        # Pick tm from {512, 256, 128} minimizing padding waste (ties -> larger tile).
        tm = min((512, 256, 128), key=lambda t: (_round_up(M, t) - M, -t))
    tm = min(tm, _round_up(M, 128))
    assert tm % 128 == 0
    M_pad = _round_up(M, tm)

    # Per-call activation prep: flatten, cast to bf16, pad only if needed.
    x2 = x.reshape(M, K)
    if x2.dtype != jnp.bfloat16:
        x2 = x2.astype(jnp.bfloat16)
    if M_pad != M or K_pad != K:
        x2 = jnp.pad(x2, ((0, M_pad - M), (0, K_pad - K)))

    grid = (M_pad // tm, N_pad // tn, K_pad // tk)
    out_dtype = x.dtype
    out_isize = jnp.dtype(out_dtype).itemsize

    # VMEM budget estimate (double-buffered inputs/outputs + scratch) with headroom.
    est = 2 * (tm * tk * 2 + tk * tn * 2 + tn * 4) + 2 * tm * tn * out_isize + tm * tn * 4
    if not params.merged:
        r = params.a_t.shape[1]
        est += 2 * K_pad * r * 2 + 2 * r * tn * 2 + tm * r * 4
    vmem_limit = int(min(48 * 1024 * 1024, max(32 * 1024 * 1024, 2 * est)))

    if params.merged:
        kernel = _merged_kernel
        in_specs = [
            pl.BlockSpec((tm, tk), lambda i, j, k: (i, k)),   # x tile
            pl.BlockSpec((tk, tn), lambda i, j, k: (k, j)),   # W_eff^T tile
            pl.BlockSpec((1, tn), lambda i, j, k: (0, j)),    # bias tile
        ]
        args = (x2, params.w_t, params.bias)
        scratch = [pltpu.VMEM((tm, tn), jnp.float32)]
        dims = ("parallel", "parallel", "arbitrary")
    else:
        r = params.a_t.shape[1]
        kernel = _lora_kernel
        in_specs = [
            pl.BlockSpec((tm, tk), lambda i, j, k: (i, k)),     # x tile
            pl.BlockSpec((tk, tn), lambda i, j, k: (k, j)),     # W_base^T tile
            pl.BlockSpec((1, tn), lambda i, j, k: (0, j)),      # bias tile
            pl.BlockSpec((K_pad, r), lambda i, j, k: (0, 0)),   # LoRA A^T — fully resident
            pl.BlockSpec((r, tn), lambda i, j, k: (0, j)),      # LoRA B_eff tile
        ]
        args = (x2, params.w_t, params.bias, params.a_t, params.b_eff)
        scratch = [pltpu.VMEM((tm, tn), jnp.float32),   # base accumulator
                   pltpu.VMEM((tm, r), jnp.float32)]    # x @ A accumulator (reused across j)
        # j must NOT be megacore-sharded: the x@A scratch computed at j==0 is reused for
        # all j of the same i, and VMEM scratch is per-core.
        dims = ("parallel", "arbitrary", "arbitrary")

    out2 = pl.pallas_call(
        kernel,
        out_shape=jax.ShapeDtypeStruct((M_pad, N_pad), out_dtype),
        grid_spec=pltpu.PrefetchScalarGridSpec(
            num_scalar_prefetch=0,
            grid=grid,
            in_specs=in_specs,
            out_specs=pl.BlockSpec((tm, tn), lambda i, j, k: (i, j)),
            scratch_shapes=scratch,
        ),
        compiler_params=pltpu.CompilerParams(
            dimension_semantics=dims,
            vmem_limit_bytes=vmem_limit,
        ),
    )(*args)

    if M_pad != M or N_pad != N:
        out2 = out2[:M, :N]
    return out2.reshape(B, S, N)


if __name__ == "__main__":
    # Small shapes consistent with the module's forward (lane-friendly feature dims).
    batch, seq = 2, 64
    in_features, out_features = 256, 256
    lora_r, lora_alpha = 8, 16
    use_dora = True

    key = jax.random.PRNGKey(0)
    kx, kw, kb, ka, kbb = jax.random.split(key, 5)

    x = jax.random.normal(kx, (batch, seq, in_features), dtype=jnp.float32)
    # base_layer = nn.Linear(in_features, out_features): weight (N, K), bias (N,)
    w_base = jax.random.normal(kw, (out_features, in_features), dtype=jnp.float32) * 0.05
    bias = jax.random.normal(kb, (out_features,), dtype=jnp.float32) * 0.05
    # LoRA weights init: normal(std=0.02)
    lora_a = jax.random.normal(ka, (lora_r, in_features), dtype=jnp.float32) * 0.02
    lora_b = jax.random.normal(kbb, (out_features, lora_r), dtype=jnp.float32) * 0.02
    # DoRA magnitude vector initialized to ones (as in __init__)
    magnitude = jnp.ones((out_features,), dtype=jnp.float32)

    scaling = lora_alpha / lora_r
    ref_f32 = (x @ w_base.T + bias) + ((x @ lora_a.T) @ lora_b.T) * scaling * magnitude

    # 1) Inference fast path: LoRA merged into the base weight -> single-GEMM kernel.
    p_merged = prepare_lora_params(w_base, bias, lora_a, lora_b, magnitude,
                                   lora_alpha=lora_alpha, lora_r=lora_r,
                                   use_dora=use_dora, merge_weights=True)
    out_m = lora_forward(x, p_merged)
    jax.block_until_ready(out_m)
    assert out_m.shape == ref_f32.shape
    assert jnp.allclose(out_m, ref_f32, atol=5e-2, rtol=5e-2), "merged path mismatch"

    # 2) Separate-adapter path: fused base + LoRA kernel with hoisted x@A, resident A.
    p_sep = prepare_lora_params(w_base, bias, lora_a, lora_b, magnitude,
                                lora_alpha=lora_alpha, lora_r=lora_r,
                                use_dora=use_dora, merge_weights=False)
    out_s = lora_forward(x, p_sep)
    jax.block_until_ready(out_s)
    assert jnp.allclose(out_s, ref_f32, atol=5e-2, rtol=5e-2), "separate path mismatch"
    assert jnp.allclose(out_m, out_s, atol=5e-2, rtol=5e-2), "paths disagree"

    print("KERNEL_OK")
</pallas_src>

<mosaic_0001>
module attributes {stable_mosaic.version = 11 : i64} {
  func.func @_merged_kernel(%arg0: i32, %arg1: i32, %arg2: i32, %arg3: memref<128x256xbf16, #tpu.memory_space<vmem>>, %arg4: memref<256x256xbf16, #tpu.memory_space<vmem>>, %arg5: memref<1x256xf32, #tpu.memory_space<vmem>>, %arg6: memref<128x256xf32, #tpu.memory_space<vmem>>, %arg7: memref<128x256xf32, #tpu.memory_space<vmem>>) attributes {dimension_semantics = [#tpu.dimension_semantics<parallel>, #tpu.dimension_semantics<parallel>, #tpu.dimension_semantics<arbitrary>], iteration_bounds = array<i64: 1, 1, 1>, scalar_prefetch = 0 : i64, scratch_operands = 1 : i64, tpu.core_type = #tpu.core_type<tc>, window_params = [{transform_indices = @transform_0, window_bounds = array<i64: 128, 256>}, {transform_indices = @transform_1, window_bounds = array<i64: 256, 256>}, {transform_indices = @transform_2, window_bounds = array<i64: 1, 256>}, {transform_indices = @transform_3, window_bounds = array<i64: 128, 256>}]} {
    %c0_i32 = arith.constant 0 : i32
    %0 = arith.cmpi eq, %arg2, %c0_i32 : i32
    %1 = arith.extui %0 : i1 to i32
    %c0_i32_0 = arith.constant 0 : i32
    %2 = arith.cmpi ne, %1, %c0_i32_0 : i32
    scf.if %2 {
      %c0_10 = arith.constant 0 : index
      %c0_11 = arith.constant 0 : index
      %12 = vector.load %arg5[%c0_10, %c0_11] : memref<1x256xf32, #tpu.memory_space<vmem>>, vector<1x256xf32>
      %13 = vector.shape_cast %12 : vector<1x256xf32> to vector<1x256xf32>
      %14 = vector.broadcast %13 : vector<1x256xf32> to vector<128x256xf32>
      %c0_12 = arith.constant 0 : index
      %c0_13 = arith.constant 0 : index
      %15 = vector.load %arg7[%c0_12, %c0_13] : memref<128x256xf32, #tpu.memory_space<vmem>>, vector<128x256xf32>
      tpu.vector_store %arg7[%c0_12, %c0_13], %14 {strides = array<i32>} : memref<128x256xf32, #tpu.memory_space<vmem>>, vector<128x256xf32>,
    } else {
    }
    %c0 = arith.constant 0 : index
    %c0_1 = arith.constant 0 : index
    %3 = vector.load %arg7[%c0, %c0_1] : memref<128x256xf32, #tpu.memory_space<vmem>>, vector<128x256xf32>
    %c0_2 = arith.constant 0 : index
    %c0_3 = arith.constant 0 : index
    %4 = vector.load %arg3[%c0_2, %c0_3] : memref<128x256xbf16, #tpu.memory_space<vmem>>, vector<128x256xbf16>
    %c0_4 = arith.constant 0 : index
    %c0_5 = arith.constant 0 : index
    %5 = vector.load %arg4[%c0_4, %c0_5] : memref<256x256xbf16, #tpu.memory_space<vmem>>, vector<256x256xbf16>
    %cst = arith.constant dense<0.000000e+00> : vector<128x256xf32>
    %6 = tpu.matmul %4, %5, %cst {dimension_numbers = #tpu.dot_dimension_numbers<[1], [0], [0], [1], [0, 0, 1, 1], [], []>} : vector<128x256xbf16>, vector<256x256xbf16>, vector<128x256xf32> -> vector<128x256xf32>
    %7 = arith.addf %3, %6 : vector<128x256xf32>
    %c0_6 = arith.constant 0 : index
    %c0_7 = arith.constant 0 : index
    %8 = vector.load %arg7[%c0_6, %c0_7] : memref<128x256xf32, #tpu.memory_space<vmem>>, vector<128x256xf32>
    tpu.vector_store %arg7[%c0_6, %c0_7], %7 {strides = array<i32>} : memref<128x256xf32, #tpu.memory_space<vmem>>, vector<128x256xf32>,
    %c0_i32_8 = arith.constant 0 : i32
    %9 = arith.cmpi eq, %arg2, %c0_i32_8 : i32
    %10 = arith.extui %9 : i1 to i32
    %c0_i32_9 = arith.constant 0 : i32
    %11 = arith.cmpi ne, %10, %c0_i32_9 : i32
    scf.if %11 {
      %c0_10 = arith.constant 0 : index
      %c0_11 = arith.constant 0 : index
      %12 = vector.load %arg7[%c0_10, %c0_11] : memref<128x256xf32, #tpu.memory_space<vmem>>, vector<128x256xf32>
      %c0_12 = arith.constant 0 : index
      %c0_13 = arith.constant 0 : index
      %13 = vector.load %arg6[%c0_12, %c0_13] : memref<128x256xf32, #tpu.memory_space<vmem>>, vector<128x256xf32>
      tpu.vector_store %arg6[%c0_12, %c0_13], %12 {strides = array<i32>} : memref<128x256xf32, #tpu.memory_space<vmem>>, vector<128x256xf32>,
    } else {
    }
    return
  }
  func.func @transform_0(%arg0: i32, %arg1: i32, %arg2: i32) -> (i32, i32) {
    %c0_i32 = arith.constant 0 : i32
    return %arg0, %arg2 : i32, i32
  }
  func.func @transform_1(%arg0: i32, %arg1: i32, %arg2: i32) -> (i32, i32) {
    %c0_i32 = arith.constant 0 : i32
    return %arg2, %arg1 : i32, i32
  }
  func.func @transform_2(%arg0: i32, %arg1: i32, %arg2: i32) -> (i32, i32) {
    %c0_i32 = arith.constant 0 : i32
    %c0_i32_0 = arith.constant 0 : i32
    return %c0_i32, %arg1 : i32, i32
  }
  func.func @transform_3(%arg0: i32, %arg1: i32, %arg2: i32) -> (i32, i32) {
    %c0_i32 = arith.constant 0 : i32
    return %arg0, %arg1 : i32, i32
  }
}

</mosaic_0001>

<llo_original>
// kernel: tpu_custom_call.1
$region0: #{tpu_custom_call.1}
  #allocation0 [shape = 'u32[]', space=smem, size = 0x4, offset = 0x4, fixed_abs, tag = 'smem constant byte address 0x4 - core index']
  #allocation1 [shape = 'u32[144,128]{1,0:T(1,128)}', space=vmem, size = 0x12000, scoped, tag = 'internal scratch']
  #allocation2 [shape = 'f32[128,256]{1,0:T(8,128)}', space=vmem, size = 0x20000, scoped, tag = 'scratch operand']
  %s0 = inlined_call_operand.hbm [shape: bf16[128,256], index: 0, kind: input, shape index: {}]
  %s1 = inlined_call_operand.hbm [shape: bf16[256,256], index: 1, kind: input, shape index: {}]
  %s2 = inlined_call_operand.vmem [shape: f32[1,256], index: 2, kind: input, shape index: {}]
  %s3 = inlined_call_operand.hbm [shape: f32[128,256], index: 3, kind: output, shape index: {}]
  %s4 = sld [smem:[#allocation0]]
  $region38: #{tpu_custom_call.1} parent=0
    _
  %s6 = ssub.s32 1, %s4
  %s7 = scalar_select 0, %s6, %s4
  $region1: #{tpu_custom_call.1} parent=0
    #allocation3 [shape = 'u8[65536]{0}', space=vmem, size = 0x10000, scoped, tag = 'input window, operand 0, single buffered']
    #allocation4 [shape = 's32[1]{0}', space=sflag, size = 0x4, scoped, tag = 'scoped memory for tpu_custom_call.1']
    #allocation5 [shape = 's32[1]{0}', space=sflag, size = 0x4, scoped, tag = 'scoped memory for tpu_custom_call.1']
    #allocation6 [shape = 'u8[131072]{0}', space=vmem, size = 0x20000, scoped, tag = 'input window, operand 1, single buffered']
    #allocation7 [shape = 's32[1]{0}', space=sflag, size = 0x4, scoped, tag = 'scoped memory for tpu_custom_call.1']
    #allocation8 [shape = 'u8[131072]{0}', space=vmem, size = 0x20000, scoped, tag = 'output window, operand 0, single buffered']
    %8 = vsyncpa [#allocation4], 0
    %9 = vsyncpa [#allocation7], 0
    %10 = vsyncpa [#allocation5], 0
    // Predicated region
    $region2: #{tpu_custom_call.1} parent=1 // pred_check
      _
    $region3: #{tpu_custom_call.1} parent=1 // pred_check_branch
      %12 = sbr.rel (0) target = $region5
    $region4: #{tpu_custom_call.1} parent=1 // pred_region
      %s14 = ssub.s32 2048, 2048
      %15 = vsyncadd [#allocation4], %s14
      %s16 = sshll.u32 [#allocation3], 4
      %s17 = int_to_ptr.vmem [resolvable:$true] %s16
      %22 = dma.hbm_to_vmem [thread:$0]  %s0, 2048, %s17, [#allocation4], 128, 128, 8
    $region5: #{tpu_custom_call.1} parent=1 // pred_fallthru
      _
    // Predicated region
    $region6: #{tpu_custom_call.1} parent=1 // pred_check
      _
    $region7: #{tpu_custom_call.1} parent=1 // pred_check_branch
      %24 = sbr.rel (0) target = $region9
    $region8: #{tpu_custom_call.1} parent=1 // pred_region
      %s26 = ssub.s32 4096, 4096
      %27 = vsyncadd [#allocation7], %s26
      %s28 = sshll.u32 [#allocation6], 4
      %s29 = int_to_ptr.vmem [resolvable:$true] %s28
      %34 = dma.hbm_to_vmem [thread:$0]  %s1, 4096, %s29, [#allocation7], 128, 128, 8
    $region9: #{tpu_custom_call.1} parent=1 // pred_fallthru
      _
    // Predicated region
    $region10: #{tpu_custom_call.1} parent=1 // pred_check
      _
    $region11: #{tpu_custom_call.1} parent=1 // pred_check_branch
      %36 = sbr.rel (0) target = $region13
    $region12: #{tpu_custom_call.1} parent=1 // pred_region
      _
    $region13: #{tpu_custom_call.1} parent=1 // pred_fallthru
      _
    // Predicated region
    $region14: #{tpu_custom_call.1} parent=1 // pred_check
      _
    $region15: #{tpu_custom_call.1} parent=1 // pred_check_branch
      %38 = sbr.rel (0) target = $region17
    $region16: #{tpu_custom_call.1} parent=1 // pred_region
      %39 = dma.done [#allocation4], 2048
    $region17: #{tpu_custom_call.1} parent=1 // pred_fallthru
      _
    // Predicated region
    $region18: #{tpu_custom_call.1} parent=1 // pred_check
      _
    $region19: #{tpu_custom_call.1} parent=1 // pred_check_branch
      %41 = sbr.rel (0) target = $region21
    $region20: #{tpu_custom_call.1} parent=1 // pred_region
      %42 = dma.done [#allocation7], 4096
    $region21: #{tpu_custom_call.1} parent=1 // pred_fallthru
      _
    %p43 = scmp.eq.s32.totalorder 0, 0
    // Predicated region
    $region22: #{tpu_custom_call.1} parent=1 // pred_check
      %p44 = pneg %p43
    $region23: #{tpu_custom_call.1} parent=1 // pred_check_branch
      %46 = sbr.rel (%p44) target = $region25
    $region24: #{tpu_custom_call.1} parent=1 // pred_region
      %v47 = vld [vmem:[%s2] sm:$0x3]
      %v49 = vlaneseq
      %v50 = vshrl.u32 %v49, 7
      %v51 = vsub.s32 0, %v50
      %v52 = vrot.slane %v47, %v51
      %v53 = vlaneseq
      %v54 = vshrl.u32 %v53, 7
      %v55 = vsub.s32 1, %v54
      %v56 = vrot.slane %v47, %v55
      %59 = vst [vmem:[#allocation2] sm:$0xff] %v52
      %60 = vst [vmem:[#allocation2 + $0x8] sm:$0xff] %v56
      %61 = vst [vmem:[#allocation2 + $0x10] sm:$0xff] %v52
      %62 = vst [vmem:[#allocation2 + $0x18] sm:$0xff] %v56
      %63 = vst [vmem:[#allocation2 + $0x20] sm:$0xff] %v52
      %64 = vst [vmem:[#allocation2 + $0x28] sm:$0xff] %v56
      %65 = vst [vmem:[#allocation2 + $0x30] sm:$0xff] %v52
      %66 = vst [vmem:[#allocation2 + $0x38] sm:$0xff] %v56
      %67 = vst [vmem:[#allocation2 + $0x40] sm:$0xff] %v52
      %68 = vst [vmem:[#allocation2 + $0x48] sm:$0xff] %v56
      %69 = vst [vmem:[#allocation2 + $0x50] sm:$0xff] %v52
      %70 = vst [vmem:[#allocation2 + $0x58] sm:$0xff] %v56
      %71 = vst [vmem:[#allocation2 + $0x60] sm:$0xff] %v52
      %72 = vst [vmem:[#allocation2 + $0x68] sm:$0xff] %v56
      %73 = vst [vmem:[#allocation2 + $0x70] sm:$0xff] %v52
      %74 = vst [vmem:[#allocation2 + $0x78] sm:$0xff] %v56
      %75 = vst [vmem:[#allocation2 + $0x80] sm:$0xff] %v52
      %76 = vst [vmem:[#allocation2 + $0x88] sm:$0xff] %v56
      %77 = vst [vmem:[#allocation2 + $0x90] sm:$0xff] %v52
      %78 = vst [vmem:[#allocation2 + $0x98] sm:$0xff] %v56
      %79 = vst [vmem:[#allocation2 + $0xa0] sm:$0xff] %v52
      %80 = vst [vmem:[#allocation2 + $0xa8] sm:$0xff] %v56
      %81 = vst [vmem:[#allocation2 + $0xb0] sm:$0xff] %v52
      %82 = vst [vmem:[#allocation2 + $0xb8] sm:$0xff] %v56
      %83 = vst [vmem:[#allocation2 + $0xc0] sm:$0xff] %v52
      %84 = vst [vmem:[#allocation2 + $0xc8] sm:$0xff] %v56
      %85 = vst [vmem:[#allocation2 + $0xd0] sm:$0xff] %v52
      %86 = vst [vmem:[#allocation2 + $0xd8] sm:$0xff] %v56
      %87 = vst [vmem:[#allocation2 + $0xe0] sm:$0xff] %v52
      %88 = vst [vmem:[#allocation2 + $0xe8] sm:$0xff] %v56
      %89 = vst [vmem:[#allocation2 + $0xf0] sm:$0xff] %v52
      %90 = vst [vmem:[#allocation2 + $0xf8] sm:$0xff] %v56
    $region25: #{tpu_custom_call.1} parent=1 // pred_fallthru
      _
    %v91 = vld [vmem:[#allocation2] sm:$0xff]
    %v92 = vld [vmem:[#allocation2 + $0x8] sm:$0xff]
    %v93 = vld [vmem:[#allocation2 + $0x10] sm:$0xff]
    %v94 = vld [vmem:[#allocation2 + $0x18] sm:$0xff]
    %v95 = vld [vmem:[#allocation2 + $0x20] sm:$0xff]
    %v96 = vld [vmem:[#allocation2 + $0x28] sm:$0xff]
    %v97 = vld [vmem:[#allocation2 + $0x30] sm:$0xff]
    %v98 = vld [vmem:[#allocation2 + $0x38] sm:$0xff]
    %v99 = vld [vmem:[#allocation2 + $0x40] sm:$0xff]
    %v100 = vld [vmem:[#allocation2 + $0x48] sm:$0xff]
    %v101 = vld [vmem:[#allocation2 + $0x50] sm:$0xff]
    %v102 = vld [vmem:[#allocation2 + $0x58] sm:$0xff]
    %v103 = vld [vmem:[#allocation2 + $0x60] sm:$0xff]
    %v104 = vld [vmem:[#allocation2 + $0x68] sm:$0xff]
    %v105 = vld [vmem:[#allocation2 + $0x70] sm:$0xff]
    %v106 = vld [vmem:[#allocation2 + $0x78] sm:$0xff]
    %v107 = vld [vmem:[#allocation2 + $0x80] sm:$0xff]
    %v108 = vld [vmem:[#allocation2 + $0x88] sm:$0xff]
    %v109 = vld [vmem:[#allocation2 + $0x90] sm:$0xff]
    %v110 = vld [vmem:[#allocation2 + $0x98] sm:$0xff]
    %v111 = vld [vmem:[#allocation2 + $0xa0] sm:$0xff]
    %v112 = vld [vmem:[#allocation2 + $0xa8] sm:$0xff]
    %v113 = vld [vmem:[#allocation2 + $0xb0] sm:$0xff]
    %v114 = vld [vmem:[#allocation2 + $0xb8] sm:$0xff]
    %v115 = vld [vmem:[#allocation2 + $0xc0] sm:$0xff]
    %v116 = vld [vmem:[#allocation2 + $0xc8] sm:$0xff]
    %v117 = vld [vmem:[#allocation2 + $0xd0] sm:$0xff]
    %v118 = vld [vmem:[#allocation2 + $0xd8] sm:$0xff]
    %v119 = vld [vmem:[#allocation2 + $0xe0] sm:$0xff]
    %v120 = vld [vmem:[#allocation2 + $0xe8] sm:$0xff]
    %v121 = vld [vmem:[#allocation2 + $0xf0] sm:$0xff]
    %v122 = vld [vmem:[#allocation2 + $0xf8] sm:$0xff]
    %v123 = vld [vmem:[#allocation3] sm:$0xff]
    %v124 = vld [vmem:[#allocation3 + $0x8] sm:$0xff]
    %v125 = vld [vmem:[#allocation3 + $0x10] sm:$0xff]
    %v126 = vld [vmem:[#allocation3 + $0x18] sm:$0xff]
    %v127 = vld [vmem:[#allocation3 + $0x20] sm:$0xff]
    %v128 = vld [vmem:[#allocation3 + $0x28] sm:$0xff]
    %v129 = vld [vmem:[#allocation3 + $0x30] sm:$0xff]
    %v130 = vld [vmem:[#allocation3 + $0x38] sm:$0xff]
    %v131 = vld [vmem:[#allocation3 + $0x40] sm:$0xff]
    %v132 = vld [vmem:[#allocation3 + $0x48] sm:$0xff]
    %v133 = vld [vmem:[#allocation3 + $0x50] sm:$0xff]
    %v134 = vld [vmem:[#allocation3 + $0x58] sm:$0xff]
    %v135 = vld [vmem:[#allocation3 + $0x60] sm:$0xff]
    %v136 = vld [vmem:[#allocation3 + $0x68] sm:$0xff]
    %v137 = vld [vmem:[#allocation3 + $0x70] sm:$0xff]
    %v138 = vld [vmem:[#allocation3 + $0x78] sm:$0xff]
    %v139 = vld [vmem:[#allocation6] sm:$0xff]
    %v140 = vld [vmem:[#allocation6 + $0x8] sm:$0xff]
    %v141 = vld [vmem:[#allocation6 + $0x10] sm:$0xff]
    %v142 = vld [vmem:[#allocation6 + $0x18] sm:$0xff]
    %v143 = vld [vmem:[#allocation6 + $0x20] sm:$0xff]
    %v144 = vld [vmem:[#allocation6 + $0x28] sm:$0xff]
    %v145 = vld [vmem:[#allocation6 + $0x30] sm:$0xff]
    %v146 = vld [vmem:[#allocation6 + $0x38] sm:$0xff]
    %v147 = vld [vmem:[#allocation6 + $0x40] sm:$0xff]
    %v148 = vld [vmem:[#allocation6 + $0x48] sm:$0xff]
    %v149 = vld [vmem:[#allocation6 + $0x50] sm:$0xff]
    %v150 = vld [vmem:[#allocation6 + $0x58] sm:$0xff]
    %v151 = vld [vmem:[#allocation6 + $0x60] sm:$0xff]
    %v152 = vld [vmem:[#allocation6 + $0x68] sm:$0xff]
    %v153 = vld [vmem:[#allocation6 + $0x70] sm:$0xff]
    %v154 = vld [vmem:[#allocation6 + $0x78] sm:$0xff]
    %v155 = vld [vmem:[#allocation6 + $0x80] sm:$0xff]
    %v156 = vld [vmem:[#allocation6 + $0x88] sm:$0xff]
    %v157 = vld [vmem:[#allocation6 + $0x90] sm:$0xff]
    %v158 = vld [vmem:[#allocation6 + $0x98] sm:$0xff]
    %v159 = vld [vmem:[#allocation6 + $0xa0] sm:$0xff]
    %v160 = vld [vmem:[#allocation6 + $0xa8] sm:$0xff]
    %v161 = vld [vmem:[#allocation6 + $0xb0] sm:$0xff]
    %v162 = vld [vmem:[#allocation6 + $0xb8] sm:$0xff]
    %v163 = vld [vmem:[#allocation6 + $0xc0] sm:$0xff]
    %v164 = vld [vmem:[#allocation6 + $0xc8] sm:$0xff]
    %v165 = vld [vmem:[#allocation6 + $0xd0] sm:$0xff]
    %v166 = vld [vmem:[#allocation6 + $0xd8] sm:$0xff]
    %v167 = vld [vmem:[#allocation6 + $0xe0] sm:$0xff]
    %v168 = vld [vmem:[#allocation6 + $0xe8] sm:$0xff]
    %v169 = vld [vmem:[#allocation6 + $0xf0] sm:$0xff]
    %v170 = vld [vmem:[#allocation6 + $0xf8] sm:$0xff]
    %v187 = vunpack.c.l.b16 %v123
    %v188 = vunpack.c.h.b16 %v123
    %v189 = vunpack.c.l.b16 %v124
    %v190 = vunpack.c.h.b16 %v124
    %v191 = vunpack.c.l.b16 %v125
    %v192 = vunpack.c.h.b16 %v125
    %v193 = vunpack.c.l.b16 %v126
    %v194 = vunpack.c.h.b16 %v126
    %v195 = vunpack.c.l.b16 %v127
    %v196 = vunpack.c.h.b16 %v127
    %v197 = vunpack.c.l.b16 %v128
    %v198 = vunpack.c.h.b16 %v128
    %v199 = vunpack.c.l.b16 %v129
    %v200 = vunpack.c.h.b16 %v129
    %v201 = vunpack.c.l.b16 %v130
    %v202 = vunpack.c.h.b16 %v130
    %v203 = vunpack.c.l.b16 %v131
    %v204 = vunpack.c.h.b16 %v131
    %v205 = vunpack.c.l.b16 %v132
    %v206 = vunpack.c.h.b16 %v132
    %v207 = vunpack.c.l.b16 %v133
    %v208 = vunpack.c.h.b16 %v133
    %v209 = vunpack.c.l.b16 %v134
    %v210 = vunpack.c.h.b16 %v134
    %v211 = vunpack.c.l.b16 %v135
    %v212 = vunpack.c.h.b16 %v135
    %v213 = vunpack.c.l.b16 %v136
    %v214 = vunpack.c.h.b16 %v136
    %v215 = vunpack.c.l.b16 %v137
    %v216 = vunpack.c.h.b16 %v137
    %v217 = vunpack.c.l.b16 %v138
    %v218 = vunpack.c.h.b16 %v138
    %v219 = vpack.c.b16 %v189, %v187
    %v220 = vpack.c.b16 %v190, %v188
    %v221 = vpack.c.b16 %v193, %v191
    %v222 = vpack.c.b16 %v194, %v192
    %v223 = vpack.c.b16 %v197, %v195
    %v224 = vpack.c.b16 %v198, %v196
    %v225 = vpack.c.b16 %v201, %v199
    %v226 = vpack.c.b16 %v202, %v200
    %v227 = vpack.c.b16 %v205, %v203
    %v228 = vpack.c.b16 %v206, %v204
    %v229 = vpack.c.b16 %v209, %v207
    %v230 = vpack.c.b16 %v210, %v208
    %v231 = vpack.c.b16 %v213, %v211
    %v232 = vpack.c.b16 %v214, %v212
    %v233 = vpack.c.b16 %v217, %v215
    %v234 = vpack.c.b16 %v218, %v216
    %v283 = vunpack.c.l.b16 %v139
    %v284 = vunpack.c.h.b16 %v139
    %v285 = vunpack.c.l.b16 %v140
    %v286 = vunpack.c.h.b16 %v140
    %v287 = vunpack.c.l.b16 %v141
    %v288 = vunpack.c.h.b16 %v141
    %v289 = vunpack.c.l.b16 %v142
    %v290 = vunpack.c.h.b16 %v142
    %v291 = vunpack.c.l.b16 %v143
    %v292 = vunpack.c.h.b16 %v143
    %v293 = vunpack.c.l.b16 %v144
    %v294 = vunpack.c.h.b16 %v144
    %v295 = vunpack.c.l.b16 %v145
    %v296 = vunpack.c.h.b16 %v145
    %v297 = vunpack.c.l.b16 %v146
    %v298 = vunpack.c.h.b16 %v146
    %v299 = vunpack.c.l.b16 %v147
    %v300 = vunpack.c.h.b16 %v147
    %v301 = vunpack.c.l.b16 %v148
    %v302 = vunpack.c.h.b16 %v148
    %v303 = vunpack.c.l.b16 %v149
    %v304 = vunpack.c.h.b16 %v149
    %v305 = vunpack.c.l.b16 %v150
    %v306 = vunpack.c.h.b16 %v150
    %v307 = vunpack.c.l.b16 %v151
    %v308 = vunpack.c.h.b16 %v151
    %v309 = vunpack.c.l.b16 %v152
    %v310 = vunpack.c.h.b16 %v152
    %v311 = vunpack.c.l.b16 %v153
    %v312 = vunpack.c.h.b16 %v153
    %v313 = vunpack.c.l.b16 %v154
    %v314 = vunpack.c.h.b16 %v154
    %v315 = vunpack.c.l.b16 %v155
    %v316 = vunpack.c.h.b16 %v155
    %v317 = vunpack.c.l.b16 %v156
    %v318 = vunpack.c.h.b16 %v156
    %v319 = vunpack.c.l.b16 %v157
    %v320 = vunpack.c.h.b16 %v157
    %v321 = vunpack.c.l.b16 %v158
    %v322 = vunpack.c.h.b16 %v158
    %v323 = vunpack.c.l.b16 %v159
    %v324 = vunpack.c.h.b16 %v159
    %v325 = vunpack.c.l.b16 %v160
    %v326 = vunpack.c.h.b16 %v160
    %v327 = vunpack.c.l.b16 %v161
    %v328 = vunpack.c.h.b16 %v161
    %v329 = vunpack.c.l.b16 %v162
    %v330 = vunpack.c.h.b16 %v162
    %v331 = vunpack.c.l.b16 %v163
    %v332 = vunpack.c.h.b16 %v163
    %v333 = vunpack.c.l.b16 %v164
    %v334 = vunpack.c.h.b16 %v164
    %v335 = vunpack.c.l.b16 %v165
    %v336 = vunpack.c.h.b16 %v165
    %v337 = vunpack.c.l.b16 %v166
    %v338 = vunpack.c.h.b16 %v166
    %v339 = vunpack.c.l.b16 %v167
    %v340 = vunpack.c.h.b16 %v167
    %v341 = vunpack.c.l.b16 %v168
    %v342 = vunpack.c.h.b16 %v168
    %v343 = vunpack.c.l.b16 %v169
    %v344 = vunpack.c.h.b16 %v169
    %v345 = vunpack.c.l.b16 %v170
    %v346 = vunpack.c.h.b16 %v170
    %v347 = vpack.c.b16 %v285, %v283
    %v348 = vpack.c.b16 %v286, %v284
    %v349 = vpack.c.b16 %v289, %v287
    %v350 = vpack.c.b16 %v290, %v288
    %v351 = vpack.c.b16 %v293, %v291
    %v352 = vpack.c.b16 %v294, %v292
    %v353 = vpack.c.b16 %v297, %v295
    %v354 = vpack.c.b16 %v298, %v296
    %v355 = vpack.c.b16 %v301, %v299
    %v356 = vpack.c.b16 %v302, %v300
    %v357 = vpack.c.b16 %v305, %v303
    %v358 = vpack.c.b16 %v306, %v304
    %v359 = vpack.c.b16 %v309, %v307
    %v360 = vpack.c.b16 %v310, %v308
    %v361 = vpack.c.b16 %v313, %v311
    %v362 = vpack.c.b16 %v314, %v312
    %v363 = vpack.c.b16 %v317, %v315
    %v364 = vpack.c.b16 %v318, %v316
    %v365 = vpack.c.b16 %v321, %v319
    %v366 = vpack.c.b16 %v322, %v320
    %v367 = vpack.c.b16 %v325, %v323
    %v368 = vpack.c.b16 %v326, %v324
    %v369 = vpack.c.b16 %v329, %v327
    %v370 = vpack.c.b16 %v330, %v328
    %v371 = vpack.c.b16 %v333, %v331
    %v372 = vpack.c.b16 %v334, %v332
    %v373 = vpack.c.b16 %v337, %v335
    %v374 = vpack.c.b16 %v338, %v336
    %v375 = vpack.c.b16 %v341, %v339
    %v376 = vpack.c.b16 %v342, %v340
    %v377 = vpack.c.b16 %v345, %v343
    %v378 = vpack.c.b16 %v346, %v344
    %411 = vmatprep.subr.bf16.mxu0 %v348
    %412 = vmatpush1.bf16.msra.mxu0 %v347
    %413 = vmatprep.subr.bf16.mxu0 %v350
    %414 = vmatpush1.bf16.msra.mxu0 %v349
    %415 = vmatprep.subr.bf16.mxu0 %v352
    %416 = vmatpush1.bf16.msra.mxu0 %v351
    %417 = vmatprep.subr.bf16.mxu0 %v354
    %418 = vmatpush1.bf16.msra.mxu0 %v353
    %419 = vmatprep.subr.bf16.mxu0 %v356
    %420 = vmatpush1.bf16.msra.mxu0 %v355
    %421 = vmatprep.subr.bf16.mxu0 %v358
    %422 = vmatpush1.bf16.msra.mxu0 %v357
    %423 = vmatprep.subr.bf16.mxu0 %v360
    %424 = vmatpush1.bf16.msra.mxu0 %v359
    %425 = vmatprep.subr.bf16.mxu0 %v362
    %426 = vmatpush1.bf16.msra.mxu0 %v361
    %427 = vmatprep.subr.bf16.mxu0 %v364
    %428 = vmatpush1.bf16.msra.mxu0 %v363
    %429 = vmatprep.subr.bf16.mxu0 %v366
    %430 = vmatpush1.bf16.msra.mxu0 %v365
    %431 = vmatprep.subr.bf16.mxu0 %v368
    %432 = vmatpush1.bf16.msra.mxu0 %v367
    %433 = vmatprep.subr.bf16.mxu0 %v370
    %434 = vmatpush1.bf16.msra.mxu0 %v369
    %435 = vmatprep.subr.bf16.mxu0 %v372
    %436 = vmatpush1.bf16.msra.mxu0 %v371
    %437 = vmatprep.subr.bf16.mxu0 %v374
    %438 = vmatpush1.bf16.msra.mxu0 %v373
    %439 = vmatprep.subr.bf16.mxu0 %v376
    %440 = vmatpush1.bf16.msra.mxu0 %v375
    %441 = vmatprep.subr.bf16.mxu0 %v378
    %442 = vmatpush1.bf16.msra.mxu0 %v377
    %443 = vmatprep.mubr.bf16.mxu0 %v220
    %444 = vmatmul.mubr.bf16.gmra.mrb[0].mxu0 %v219
    %v445 = vpop.f32.mrb[0].mxu0
    %v446 = vadd.f32 0.0, %v445
    %v447 = vpop.f32.mrb[0].mxu0
    %v448 = vadd.f32 0.0, %v447
    %v449 = vpop.f32.mrb[0].mxu0
    %v450 = vadd.f32 0.0, %v449
    %v451 = vpop.f32.mrb[0].mxu0
    %v452 = vadd.f32 0.0, %v451
    %453 = vmatprep.mubr.bf16.mxu0 %v222
    %454 = vmatmul.mubr.bf16.gmra.mrb[0].mxu0 %v221
    %v455 = vpop.f32.mrb[0].mxu0
    %v456 = vadd.f32 0.0, %v455
    %v457 = vpop.f32.mrb[0].mxu0
    %v458 = vadd.f32 0.0, %v457
    %v459 = vpop.f32.mrb[0].mxu0
    %v460 = vadd.f32 0.0, %v459
    %v461 = vpop.f32.mrb[0].mxu0
    %v462 = vadd.f32 0.0, %v461
    %463 = vmatprep.mubr.bf16.mxu0 %v224
    %464 = vmatmul.mubr.bf16.gmra.mrb[0].mxu0 %v223
    %v465 = vpop.f32.mrb[0].mxu0
    %v466 = vadd.f32 0.0, %v465
    %v467 = vpop.f32.mrb[0].mxu0
    %v468 = vadd.f32 0.0, %v467
    %v469 = vpop.f32.mrb[0].mxu0
    %v470 = vadd.f32 0.0, %v469
    %v471 = vpop.f32.mrb[0].mxu0
    %v472 = vadd.f32 0.0, %v471
    %473 = vmatprep.mubr.bf16.mxu0 %v226
    %474 = vmatmul.mubr.bf16.gmra.mrb[0].mxu0 %v225
    %v475 = vpop.f32.mrb[0].mxu0
    %v476 = vadd.f32 0.0, %v475
    %v477 = vpop.f32.mrb[0].mxu0
    %v478 = vadd.f32 0.0, %v477
    %v479 = vpop.f32.mrb[0].mxu0
    %v480 = vadd.f32 0.0, %v479
    %v481 = vpop.f32.mrb[0].mxu0
    %v482 = vadd.f32 0.0, %v481
    %483 = vmatprep.mubr.bf16.mxu0 %v228
    %484 = vmatmul.mubr.bf16.gmra.mrb[0].mxu0 %v227
    %v485 = vpop.f32.mrb[0].mxu0
    %v486 = vadd.f32 0.0, %v485
    %v487 = vpop.f32.mrb[0].mxu0
    %v488 = vadd.f32 0.0, %v487
    %v489 = vpop.f32.mrb[0].mxu0
    %v490 = vadd.f32 0.0, %v489
    %v491 = vpop.f32.mrb[0].mxu0
    %v492 = vadd.f32 0.0, %v491
    %493 = vmatprep.mubr.bf16.mxu0 %v230
    %494 = vmatmul.mubr.bf16.gmra.mrb[0].mxu0 %v229
    %v495 = vpop.f32.mrb[0].mxu0
    %v496 = vadd.f32 0.0, %v495
    %v497 = vpop.f32.mrb[0].mxu0
    %v498 = vadd.f32 0.0, %v497
    %v499 = vpop.f32.mrb[0].mxu0
    %v500 = vadd.f32 0.0, %v499
    %v501 = vpop.f32.mrb[0].mxu0
    %v502 = vadd.f32 0.0, %v501
    %503 = vmatprep.mubr.bf16.mxu0 %v232
    %504 = vmatmul.mubr.bf16.gmra.mrb[0].mxu0 %v231
    %v505 = vpop.f32.mrb[0].mxu0
    %v506 = vadd.f32 0.0, %v505
    %v507 = vpop.f32.mrb[0].mxu0
    %v508 = vadd.f32 0.0, %v507
    %v509 = vpop.f32.mrb[0].mxu0
    %v510 = vadd.f32 0.0, %v509
    %v511 = vpop.f32.mrb[0].mxu0
    %v512 = vadd.f32 0.0, %v511
    %513 = vmatprep.mubr.bf16.mxu0 %v234
    %514 = vmatmul.mubr.bf16.gmra.mrb[0].mxu0 %v233
    %v515 = vpop.f32.mrb[0].mxu0
    %v516 = vadd.f32 0.0, %v515
    %v517 = vpop.f32.mrb[0].mxu0
    %v518 = vadd.f32 0.0, %v517
    %v519 = vpop.f32.mrb[0].mxu0
    %v520 = vadd.f32 0.0, %v519
    %v521 = vpop.f32.mrb[0].mxu0
    %v522 = vadd.f32 0.0, %v521
    %523 = vdwg.mxu0
    %v524 = vadd.f32 %v91, %v446
    %v525 = vadd.f32 %v92, %v448
    %v526 = vadd.f32 %v93, %v450
    %v527 = vadd.f32 %v94, %v452
    %v528 = vadd.f32 %v95, %v456
    %v529 = vadd.f32 %v96, %v458
    %v530 = vadd.f32 %v97, %v460
    %v531 = vadd.f32 %v98, %v462
    %v532 = vadd.f32 %v99, %v466
    %v533 = vadd.f32 %v100, %v468
    %v534 = vadd.f32 %v101, %v470
    %v535 = vadd.f32 %v102, %v472
    %v536 = vadd.f32 %v103, %v476
    %v537 = vadd.f32 %v104, %v478
    %v538 = vadd.f32 %v105, %v480
    %v539 = vadd.f32 %v106, %v482
    %v540 = vadd.f32 %v107, %v486
    %v541 = vadd.f32 %v108, %v488
    %v542 = vadd.f32 %v109, %v490
    %v543 = vadd.f32 %v110, %v492
    %v544 = vadd.f32 %v111, %v496
    %v545 = vadd.f32 %v112, %v498
    %v546 = vadd.f32 %v113, %v500
    %v547 = vadd.f32 %v114, %v502
    %v548 = vadd.f32 %v115, %v506
    %v549 = vadd.f32 %v116, %v508
    %v550 = vadd.f32 %v117, %v510
    %v551 = vadd.f32 %v118, %v512
    %v552 = vadd.f32 %v119, %v516
    %v553 = vadd.f32 %v120, %v518
    %v554 = vadd.f32 %v121, %v520
    %v555 = vadd.f32 %v122, %v522
    %556 = vst [vmem:[#allocation2] sm:$0xff] %v524
    %557 = vst [vmem:[#allocation2 + $0x8] sm:$0xff] %v525
    %558 = vst [vmem:[#allocation2 + $0x10] sm:$0xff] %v526
    %559 = vst [vmem:[#allocation2 + $0x18] sm:$0xff] %v527
    %560 = vst [vmem:[#allocation2 + $0x20] sm:$0xff] %v528
    %561 = vst [vmem:[#allocation2 + $0x28] sm:$0xff] %v529
    %562 = vst [vmem:[#allocation2 + $0x30] sm:$0xff] %v530
    %563 = vst [vmem:[#allocation2 + $0x38] sm:$0xff] %v531
    %564 = vst [vmem:[#allocation2 + $0x40] sm:$0xff] %v532
    %565 = vst [vmem:[#allocation2 + $0x48] sm:$0xff] %v533
    %566 = vst [vmem:[#allocation2 + $0x50] sm:$0xff] %v534
    %567 = vst [vmem:[#allocation2 + $0x58] sm:$0xff] %v535
    %568 = vst [vmem:[#allocation2 + $0x60] sm:$0xff] %v536
    %569 = vst [vmem:[#allocation2 + $0x68] sm:$0xff] %v537
    %570 = vst [vmem:[#allocation2 + $0x70] sm:$0xff] %v538
    %571 = vst [vmem:[#allocation2 + $0x78] sm:$0xff] %v539
    %572 = vst [vmem:[#allocation2 + $0x80] sm:$0xff] %v540
    %573 = vst [vmem:[#allocation2 + $0x88] sm:$0xff] %v541
    %574 = vst [vmem:[#allocation2 + $0x90] sm:$0xff] %v542
    %575 = vst [vmem:[#allocation2 + $0x98] sm:$0xff] %v543
    %576 = vst [vmem:[#allocation2 + $0xa0] sm:$0xff] %v544
    %577 = vst [vmem:[#allocation2 + $0xa8] sm:$0xff] %v545
    %578 = vst [vmem:[#allocation2 + $0xb0] sm:$0xff] %v546
    %579 = vst [vmem:[#allocation2 + $0xb8] sm:$0xff] %v547
    %580 = vst [vmem:[#allocation2 + $0xc0] sm:$0xff] %v548
    %581 = vst [vmem:[#allocation2 + $0xc8] sm:$0xff] %v549
    %582 = vst [vmem:[#allocation2 + $0xd0] sm:$0xff] %v550
    %583 = vst [vmem:[#allocation2 + $0xd8] sm:$0xff] %v551
    %584 = vst [vmem:[#allocation2 + $0xe0] sm:$0xff] %v552
    %585 = vst [vmem:[#allocation2 + $0xe8] sm:$0xff] %v553
    %586 = vst [vmem:[#allocation2 + $0xf0] sm:$0xff] %v554
    %587 = vst [vmem:[#allocation2 + $0xf8] sm:$0xff] %v555
    // Predicated region
    $region26: #{tpu_custom_call.1} parent=1 // pred_check
      %p588 = pneg %p43
    $region27: #{tpu_custom_call.1} parent=1 // pred_check_branch
      %590 = sbr.rel (%p588) target = $region29
    $region28: #{tpu_custom_call.1} parent=1 // pred_region
      %v591 = vld [vmem:[#allocation2] sm:$0xff]
      %v592 = vld [vmem:[#allocation2 + $0x8] sm:$0xff]
      %v593 = vld [vmem:[#allocation2 + $0x10] sm:$0xff]
      %v594 = vld [vmem:[#allocation2 + $0x18] sm:$0xff]
      %v595 = vld [vmem:[#allocation2 + $0x20] sm:$0xff]
      %v596 = vld [vmem:[#allocation2 + $0x28] sm:$0xff]
      %v597 = vld [vmem:[#allocation2 + $0x30] sm:$0xff]
      %v598 = vld [vmem:[#allocation2 + $0x38] sm:$0xff]
      %v599 = vld [vmem:[#allocation2 + $0x40] sm:$0xff]
      %v600 = vld [vmem:[#allocation2 + $0x48] sm:$0xff]
      %v601 = vld [vmem:[#allocation2 + $0x50] sm:$0xff]
      %v602 = vld [vmem:[#allocation2 + $0x58] sm:$0xff]
      %v603 = vld [vmem:[#allocation2 + $0x60] sm:$0xff]
      %v604 = vld [vmem:[#allocation2 + $0x68] sm:$0xff]
      %v605 = vld [vmem:[#allocation2 + $0x70] sm:$0xff]
      %v606 = vld [vmem:[#allocation2 + $0x78] sm:$0xff]
      %v607 = vld [vmem:[#allocation2 + $0x80] sm:$0xff]
      %v608 = vld [vmem:[#allocation2 + $0x88] sm:$0xff]
      %v609 = vld [vmem:[#allocation2 + $0x90] sm:$0xff]
      %v610 = vld [vmem:[#allocation2 + $0x98] sm:$0xff]
      %v611 = vld [vmem:[#allocation2 + $0xa0] sm:$0xff]
      %v612 = vld [vmem:[#allocation2 + $0xa8] sm:$0xff]
      %v613 = vld [vmem:[#allocation2 + $0xb0] sm:$0xff]
      %v614 = vld [vmem:[#allocation2 + $0xb8] sm:$0xff]
      %v615 = vld [vmem:[#allocation2 + $0xc0] sm:$0xff]
      %v616 = vld [vmem:[#allocation2 + $0xc8] sm:$0xff]
      %v617 = vld [vmem:[#allocation2 + $0xd0] sm:$0xff]
      %v618 = vld [vmem:[#allocation2 + $0xd8] sm:$0xff]
      %v619 = vld [vmem:[#allocation2 + $0xe0] sm:$0xff]
      %v620 = vld [vmem:[#allocation2 + $0xe8] sm:$0xff]
      %v621 = vld [vmem:[#allocation2 + $0xf0] sm:$0xff]
      %v622 = vld [vmem:[#allocation2 + $0xf8] sm:$0xff]
      %623 = vst [vmem:[#allocation8] sm:$0xff] %v591
      %624 = vst [vmem:[#allocation8 + $0x8] sm:$0xff] %v592
      %625 = vst [vmem:[#allocation8 + $0x10] sm:$0xff] %v593
      %626 = vst [vmem:[#allocation8 + $0x18] sm:$0xff] %v594
      %627 = vst [vmem:[#allocation8 + $0x20] sm:$0xff] %v595
      %628 = vst [vmem:[#allocation8 + $0x28] sm:$0xff] %v596
      %629 = vst [vmem:[#allocation8 + $0x30] sm:$0xff] %v597
      %630 = vst [vmem:[#allocation8 + $0x38] sm:$0xff] %v598
      %631 = vst [vmem:[#allocation8 + $0x40] sm:$0xff] %v599
      %632 = vst [vmem:[#allocation8 + $0x48] sm:$0xff] %v600
      %633 = vst [vmem:[#allocation8 + $0x50] sm:$0xff] %v601
      %634 = vst [vmem:[#allocation8 + $0x58] sm:$0xff] %v602
      %635 = vst [vmem:[#allocation8 + $0x60] sm:$0xff] %v603
      %636 = vst [vmem:[#allocation8 + $0x68] sm:$0xff] %v604
      %637 = vst [vmem:[#allocation8 + $0x70] sm:$0xff] %v605
      %638 = vst [vmem:[#allocation8 + $0x78] sm:$0xff] %v606
      %639 = vst [vmem:[#allocation8 + $0x80] sm:$0xff] %v607
      %640 = vst [vmem:[#allocation8 + $0x88] sm:$0xff] %v608
      %641 = vst [vmem:[#allocation8 + $0x90] sm:$0xff] %v609
      %642 = vst [vmem:[#allocation8 + $0x98] sm:$0xff] %v610
      %643 = vst [vmem:[#allocation8 + $0xa0] sm:$0xff] %v611
      %644 = vst [vmem:[#allocation8 + $0xa8] sm:$0xff] %v612
      %645 = vst [vmem:[#allocation8 + $0xb0] sm:$0xff] %v613
      %646 = vst [vmem:[#allocation8 + $0xb8] sm:$0xff] %v614
      %647 = vst [vmem:[#allocation8 + $0xc0] sm:$0xff] %v615
      %648 = vst [vmem:[#allocation8 + $0xc8] sm:$0xff] %v616
      %649 = vst [vmem:[#allocation8 + $0xd0] sm:$0xff] %v617
      %650 = vst [vmem:[#allocation8 + $0xd8] sm:$0xff] %v618
      %651 = vst [vmem:[#allocation8 + $0xe0] sm:$0xff] %v619
      %652 = vst [vmem:[#allocation8 + $0xe8] sm:$0xff] %v620
      %653 = vst [vmem:[#allocation8 + $0xf0] sm:$0xff] %v621
      %654 = vst [vmem:[#allocation8 + $0xf8] sm:$0xff] %v622
    $region29: #{tpu_custom_call.1} parent=1 // pred_fallthru
      _
    // Predicated region
    $region30: #{tpu_custom_call.1} parent=1 // pred_check
      _
    $region31: #{tpu_custom_call.1} parent=1 // pred_check_branch
      %656 = sbr.rel (0) target = $region33
    $region32: #{tpu_custom_call.1} parent=1 // pred_region
      %s658 = ssub.s32 4096, 4096
      %659 = vsyncadd [#allocation5], %s658
      %s660 = sshll.u32 [#allocation8], 4
      %s661 = int_to_ptr.vmem [resolvable:$true] %s660
      %666 = dma.vmem_to_hbm [thread:$0]  %s661, 4096, %s3, [#allocation5], 256, 256, 16
    $region33: #{tpu_custom_call.1} parent=1 // pred_fallthru
      _
    // Predicated region
    $region34: #{tpu_custom_call.1} parent=1 // pred_check
      _
    $region35: #{tpu_custom_call.1} parent=1 // pred_check_branch
      %668 = sbr.rel (0) target = $region37
    $region36: #{tpu_custom_call.1} parent=1 // pred_region
      %669 = dma.done [#allocation5], 4096
    $region37: #{tpu_custom_call.1} parent=1 // pred_fallthru
      _
    %670 = vsyncpa [#allocation4], 1
    %671 = vsyncpa [#allocation7], 1
    %672 = vsyncpa [#allocation5], 1

</llo_original>
